<compile_context>
chip_gen: v6e
topology: v6e:2x2x1
jax: 0.10.0
libtpu: 0.0.40
codegen_flags: <defaults>
</compile_context>

<pallas_src>
import functools

import jax
import jax.numpy as jnp
from jax import lax
from jax.experimental import pallas as pl
from jax.experimental.pallas import tpu as pltpu


def _swap_kernel(expx_ref, expy_ref, x_ref, o_ref, *, H, W, inv2sx2, inv2sy2):
    """One (batch n, q-tile) grid step.

    expx_ref / expy_ref : VMEM (1, 1, TQ)  expected x/y positions (q-tile on lanes)
    x_ref               : VMEM (1, C, HW)  whole image, channels on sublanes,
                                           pixels on lanes (lane-dense loads)
    o_ref               : VMEM (1, C, TQ)  lane-dense stores
    """
    HW = H * W
    TQ = o_ref.shape[2]

    ex = expx_ref[0]                                                     # (1, TQ)
    ey = expy_ref[0]                                                     # (1, TQ)

    # Input-pixel coordinates on the sublane axis.
    xs = lax.broadcasted_iota(jnp.int32, (W, 1), 0).astype(jnp.float32)  # (W, 1)
    ys = lax.broadcasted_iota(jnp.int32, (H, 1), 0).astype(jnp.float32)  # (H, 1)

    # Separable Gaussian: exp(-(dx^2 a + dy^2 b)) = exp(-dx^2 a) * exp(-dy^2 b),
    # so only (H + W) * TQ transcendentals instead of HW * TQ.
    lx = -((xs - ex) ** 2) * inv2sx2                                     # (W, TQ)
    ly = -((ys - ey) ** 2) * inv2sy2                                     # (H, TQ)
    # Per-q max subtraction: cancels under normalization, guarantees denom >= 1
    # (no underflow -> no inf/NaN even for far-off centers / tiny sigma).
    lx = lx - jnp.max(lx, axis=0, keepdims=True)
    ly = ly - jnp.max(ly, axis=0, keepdims=True)
    wx = jnp.exp(lx)                                                     # (W, TQ)
    wy = jnp.exp(ly)                                                     # (H, TQ)

    # Denominator factorizes: Z[q] = (sum_x wx[x,q]) * (sum_y wy[y,q]) >= 1.
    denom = (jnp.sum(wx, axis=0, keepdims=True) *
             jnp.sum(wy, axis=0, keepdims=True))                         # (1, TQ)

    # Unnormalized weight tile via outer-product multiply, input pixel p on sublanes,
    # output pixel q on lanes.  (H, W, TQ) -> (HW, TQ) is a layout-preserving
    # row-major collapse (W multiple of 8 in typical image sizes).
    w = (wy.reshape(H, 1, TQ) * wx.reshape(1, W, TQ)).reshape(HW, TQ)    # (HW, TQ)
    # NOTE: casting `w`/`x` to bf16 here would halve MXU input bandwidth but costs
    # ~1e-3 relative error; kept f32 to hold the 1e-4 accuracy target of the test.

    # (C, HW) @ (HW, TQ) on the MXU; normalize on the small (C, TQ) output instead of
    # per weight element (saves HW*TQ VPU multiplies and an HW-wide reduce).
    acc = jnp.dot(x_ref[0], w, preferred_element_type=jnp.float32)       # (C, TQ)
    o_ref[0] = (acc * pl.reciprocal(denom, approx=False)).astype(o_ref.dtype)


def _pick_tq(HW):
    for cand in (512, 256, 128):
        if HW % cand == 0:
            return cand
    return HW  # tiny / odd sizes: single full-width tile (block == full dim)


def swapv2_forward(x_nchw, exPx, exPy, sigmax, sigmay, *, tq=None):
    """x_nchw: (N, C, H, W) f32; exPx/exPy: (N, H, W) f32 pixel coords;
    sigmax/sigmay: static python floats."""
    N, C, H, W = x_nchw.shape
    HW = H * W
    if tq is None:
        tq = _pick_tq(HW)
    assert HW % tq == 0, (HW, tq)
    n_q = HW // tq

    # Free contiguous reshapes (no HBM transposes): NCHW -> (N, C, HW); (N,H,W) -> (N,1,HW).
    x = x_nchw.reshape(N, C, HW).astype(jnp.float32)
    ex = exPx.reshape(N, 1, HW).astype(jnp.float32)
    ey = exPy.reshape(N, 1, HW).astype(jnp.float32)

    kernel = functools.partial(
        _swap_kernel, H=H, W=W,
        inv2sx2=1.0 / (2.0 * float(sigmax) ** 2),
        inv2sy2=1.0 / (2.0 * float(sigmay) ** 2),
    )

    # VMEM budget: double-buffered blocks + the (HW, tq) weight tile + headroom,
    # clamped to 32 MiB which is valid on v5e/v6e (128 MiB) and v7x (64 MiB physical).
    blk_bytes = 4 * (C * HW + 2 * tq + C * tq)          # x + ex + ey + out blocks (f32)
    w_bytes = 4 * (HW + H + W + 8) * tq                 # weight tile + separable temps
    vmem_limit = int(min(max(2 * blk_bytes + w_bytes + (4 << 20), 16 << 20), 32 << 20))
    # TODO(synk): for HW >~ 4096 also tile the input-pixel axis and accumulate
    # numerator/denominator online so live buffers stay bounded on v7x's 64 MiB VMEM.

    out = pl.pallas_call(
        kernel,
        out_shape=jax.ShapeDtypeStruct((N, C, HW), jnp.float32),
        grid_spec=pltpu.PrefetchScalarGridSpec(
            num_scalar_prefetch=0,
            grid=(N, n_q),
            in_specs=[
                pl.BlockSpec((1, 1, tq), lambda n, q: (n, 0, q)),   # exPx q-tile
                pl.BlockSpec((1, 1, tq), lambda n, q: (n, 0, q)),   # exPy q-tile
                pl.BlockSpec((1, C, HW), lambda n, q: (n, 0, 0)),   # whole image (reused over q)
            ],
            out_specs=pl.BlockSpec((1, C, tq), lambda n, q: (n, 0, q)),
        ),
        compiler_params=pltpu.CompilerParams(
            dimension_semantics=("parallel", "parallel"),
            vmem_limit_bytes=vmem_limit,
        ),
    )(ex, ey, x)

    return out.reshape(N, C, H, W)


def _reference(x_nchw, exPx, exPy, sigmax, sigmay):
    # Pure-JAX reference for sanity checking.
    N, C, H, W = x_nchw.shape
    ys, xs = jnp.meshgrid(jnp.arange(H, dtype=jnp.float32),
                          jnp.arange(W, dtype=jnp.float32), indexing="ij")
    xs = xs.reshape(1, 1, 1, H, W)
    ys = ys.reshape(1, 1, 1, H, W)
    ex = exPx.reshape(N, H, W, 1, 1)
    ey = exPy.reshape(N, H, W, 1, 1)
    logits = -((xs - ex) ** 2 / (2.0 * sigmax ** 2) + (ys - ey) ** 2 / (2.0 * sigmay ** 2))
    w = jnp.exp(logits)
    w = w / jnp.sum(w, axis=(-2, -1), keepdims=True)          # (N,H,W,H,W)
    return jnp.einsum("nijyx,ncyx->ncij", w, x_nchw)


if __name__ == "__main__":
    key = jax.random.PRNGKey(0)
    k1, k2, k3 = jax.random.split(key, 3)

    N, C, H, W = 2, 4, 16, 16
    x = jax.random.normal(k1, (N, C, H, W), dtype=jnp.float32)
    # Expected positions in pixel coordinates, jittered around each pixel.
    ys, xs = jnp.meshgrid(jnp.arange(H, dtype=jnp.float32),
                          jnp.arange(W, dtype=jnp.float32), indexing="ij")
    exPx = xs[None] + 0.5 * jax.random.normal(k2, (N, H, W), dtype=jnp.float32)
    exPy = ys[None] + 0.5 * jax.random.normal(k3, (N, H, W), dtype=jnp.float32)
    sigmax, sigmay = 1.5, 1.5

    # tq=128 exercises the multi-tile q grid (HW=256 -> grid (2, 2)).
    out = swapv2_forward(x, exPx, exPy, sigmax, sigmay, tq=128)
    out = jax.block_until_ready(out)

    ref = _reference(x, exPx, exPy, sigmax, sigmay)
    assert out.shape == (N, C, H, W)
    assert jnp.max(jnp.abs(out - ref)) < 1e-4

    print("KERNEL_OK")
</pallas_src>

<mosaic_0001>
module attributes {stable_mosaic.version = 11 : i64} {
  func.func @_swap_kernel(%arg0: i32, %arg1: i32, %arg2: memref<1x1x128xf32, #tpu.memory_space<vmem>>, %arg3: memref<1x1x128xf32, #tpu.memory_space<vmem>>, %arg4: memref<1x4x256xf32, #tpu.memory_space<vmem>>, %arg5: memref<1x4x128xf32, #tpu.memory_space<vmem>>) attributes {dimension_semantics = [#tpu.dimension_semantics<parallel>, #tpu.dimension_semantics<parallel>], iteration_bounds = array<i64: 2, 2>, scalar_prefetch = 0 : i64, scratch_operands = 0 : i64, tpu.core_type = #tpu.core_type<tc>, window_params = [{transform_indices = @transform_0, window_bounds = array<i64: 1, 1, 128>}, {transform_indices = @transform_1, window_bounds = array<i64: 1, 1, 128>}, {transform_indices = @transform_2, window_bounds = array<i64: 1, 4, 256>}, {transform_indices = @transform_3, window_bounds = array<i64: 1, 4, 128>}]} {
    %c0 = arith.constant 0 : index
    %c0_0 = arith.constant 0 : index
    %c0_1 = arith.constant 0 : index
    %0 = vector.load %arg2[%c0, %c0_0, %c0_1] : memref<1x1x128xf32, #tpu.memory_space<vmem>>, vector<1x1x128xf32>
    %1 = vector.shape_cast %0 : vector<1x1x128xf32> to vector<1x128xf32>
    %c0_2 = arith.constant 0 : index
    %c0_3 = arith.constant 0 : index
    %c0_4 = arith.constant 0 : index
    %2 = vector.load %arg3[%c0_2, %c0_3, %c0_4] : memref<1x1x128xf32, #tpu.memory_space<vmem>>, vector<1x1x128xf32>
    %3 = vector.shape_cast %2 : vector<1x1x128xf32> to vector<1x128xf32>
    %4 = tpu.iota {dimensions = array<i32: 0>} : vector<16x1xi32>
    %5 = arith.sitofp %4 : vector<16x1xi32> to vector<16x1xf32>
    %6 = tpu.iota {dimensions = array<i32: 0>} : vector<16x1xi32>
    %7 = arith.sitofp %6 : vector<16x1xi32> to vector<16x1xf32>
    %8 = vector.broadcast %5 : vector<16x1xf32> to vector<16x128xf32>
    %9 = vector.broadcast %1 : vector<1x128xf32> to vector<16x128xf32>
    %10 = arith.subf %8, %9 : vector<16x128xf32>
    %11 = arith.mulf %10, %10 : vector<16x128xf32>
    %cst = arith.constant 0.000000e+00 : f32
    %12 = vector.broadcast %cst : f32 to vector<16x128xf32>
    %13 = arith.subf %12, %11 : vector<16x128xf32>
    %cst_5 = arith.constant 0.222222224 : f32
    %14 = vector.broadcast %cst_5 : f32 to vector<16x128xf32>
    %15 = arith.mulf %13, %14 : vector<16x128xf32>
    %16 = vector.broadcast %7 : vector<16x1xf32> to vector<16x128xf32>
    %17 = vector.broadcast %3 : vector<1x128xf32> to vector<16x128xf32>
    %18 = arith.subf %16, %17 : vector<16x128xf32>
    %19 = arith.mulf %18, %18 : vector<16x128xf32>
    %cst_6 = arith.constant 0.000000e+00 : f32
    %20 = vector.broadcast %cst_6 : f32 to vector<16x128xf32>
    %21 = arith.subf %20, %19 : vector<16x128xf32>
    %cst_7 = arith.constant 0.222222224 : f32
    %22 = vector.broadcast %cst_7 : f32 to vector<16x128xf32>
    %23 = arith.mulf %21, %22 : vector<16x128xf32>
    %cst_8 = arith.constant dense<0xFF800000> : vector<128xf32>
    %24 = vector.multi_reduction <maximumf>, %15, %cst_8 [0] : vector<16x128xf32> to vector<128xf32>
    %25 = vector.shape_cast %24 : vector<128xf32> to vector<1x128xf32>
    %26 = vector.broadcast %25 : vector<1x128xf32> to vector<16x128xf32>
    %27 = arith.subf %15, %26 : vector<16x128xf32>
    %cst_9 = arith.constant dense<0xFF800000> : vector<128xf32>
    %28 = vector.multi_reduction <maximumf>, %23, %cst_9 [0] : vector<16x128xf32> to vector<128xf32>
    %29 = vector.shape_cast %28 : vector<128xf32> to vector<1x128xf32>
    %30 = vector.broadcast %29 : vector<1x128xf32> to vector<16x128xf32>
    %31 = arith.subf %23, %30 : vector<16x128xf32>
    %32 = math.exp %27 : vector<16x128xf32>
    %33 = math.exp %31 : vector<16x128xf32>
    %cst_10 = arith.constant dense<0.000000e+00> : vector<128xf32>
    %34 = vector.multi_reduction <add>, %32, %cst_10 [0] : vector<16x128xf32> to vector<128xf32>
    %35 = vector.shape_cast %34 : vector<128xf32> to vector<1x128xf32>
    %cst_11 = arith.constant dense<0.000000e+00> : vector<128xf32>
    %36 = vector.multi_reduction <add>, %33, %cst_11 [0] : vector<16x128xf32> to vector<128xf32>
    %37 = vector.shape_cast %36 : vector<128xf32> to vector<1x128xf32>
    %38 = arith.mulf %35, %37 : vector<1x128xf32>
    %39 = vector.shape_cast %33 : vector<16x128xf32> to vector<16x1x128xf32>
    %40 = vector.shape_cast %32 : vector<16x128xf32> to vector<1x16x128xf32>
    %41 = vector.broadcast %39 : vector<16x1x128xf32> to vector<16x16x128xf32>
    %42 = vector.broadcast %40 : vector<1x16x128xf32> to vector<16x16x128xf32>
    %43 = arith.mulf %41, %42 : vector<16x16x128xf32>
    %44 = vector.shape_cast %43 : vector<16x16x128xf32> to vector<256x128xf32>
    %c0_12 = arith.constant 0 : index
    %c0_13 = arith.constant 0 : index
    %c0_14 = arith.constant 0 : index
    %45 = vector.load %arg4[%c0_12, %c0_13, %c0_14] : memref<1x4x256xf32, #tpu.memory_space<vmem>>, vector<1x4x256xf32>
    %46 = vector.shape_cast %45 : vector<1x4x256xf32> to vector<4x256xf32>
    %cst_15 = arith.constant dense<0.000000e+00> : vector<4x128xf32>
    %47 = tpu.matmul %46, %44, %cst_15 {dimension_numbers = #tpu.dot_dimension_numbers<[1], [0], [0], [1], [0, 0, 1, 1], [], []>} : vector<4x256xf32>, vector<256x128xf32>, vector<4x128xf32> -> vector<4x128xf32>
    %48 = tpu.reciprocal %38 : vector<1x128xf32> -> vector<1x128xf32>
    %49 = vector.broadcast %48 : vector<1x128xf32> to vector<4x128xf32>
    %50 = arith.mulf %47, %49 : vector<4x128xf32>
    %c0_16 = arith.constant 0 : index
    %c0_17 = arith.constant 0 : index
    %c0_18 = arith.constant 0 : index
    %51 = vector.load %arg5[%c0_16, %c0_17, %c0_18] : memref<1x4x128xf32, #tpu.memory_space<vmem>>, vector<1x4x128xf32>
    %52 = vector.shape_cast %51 : vector<1x4x128xf32> to vector<4x128xf32>
    %53 = vector.shape_cast %50 : vector<4x128xf32> to vector<1x4x128xf32>
    tpu.vector_store %arg5[%c0_16, %c0_17, %c0_18], %53 {strides = array<i32>} : memref<1x4x128xf32, #tpu.memory_space<vmem>>, vector<1x4x128xf32>,
    return
  }
  func.func @transform_0(%arg0: i32, %arg1: i32) -> (i32, i32, i32) {
    %c0_i32 = arith.constant 0 : i32
    %c0_i32_0 = arith.constant 0 : i32
    return %arg0, %c0_i32, %arg1 : i32, i32, i32
  }
  func.func @transform_1(%arg0: i32, %arg1: i32) -> (i32, i32, i32) {
    %c0_i32 = arith.constant 0 : i32
    %c0_i32_0 = arith.constant 0 : i32
    return %arg0, %c0_i32, %arg1 : i32, i32, i32
  }
  func.func @transform_2(%arg0: i32, %arg1: i32) -> (i32, i32, i32) {
    %c0_i32 = arith.constant 0 : i32
    %c0_i32_0 = arith.constant 0 : i32
    %c0_i32_1 = arith.constant 0 : i32
    return %arg0, %c0_i32, %c0_i32_0 : i32, i32, i32
  }
  func.func @transform_3(%arg0: i32, %arg1: i32) -> (i32, i32, i32) {
    %c0_i32 = arith.constant 0 : i32
    %c0_i32_0 = arith.constant 0 : i32
    return %arg0, %c0_i32, %arg1 : i32, i32, i32
  }
}

</mosaic_0001>

<llo_original>
// kernel: tpu_custom_call.1
$region0: #{tpu_custom_call.1}
  #allocation0 [shape = 'u32[]', space=smem, size = 0x4, offset = 0x4, fixed_abs, tag = 'smem constant byte address 0x4 - core index']
  #allocation1 [shape = 'u32[144,128]{1,0:T(1,128)}', space=vmem, size = 0x12000, scoped, tag = 'internal scratch']
  %s0 = inlined_call_operand.hbm [shape: f32[2,1,256], index: 0, kind: input, shape index: {}]
  %s1 = inlined_call_operand.hbm [shape: f32[2,1,256], index: 1, kind: input, shape index: {}]
  %s2 = inlined_call_operand.hbm [shape: f32[2,4,256], index: 2, kind: input, shape index: {}]
  %s3 = inlined_call_operand.hbm [shape: f32[2,4,256], index: 3, kind: output, shape index: {}]
  %s4 = sld [smem:[#allocation0]]
  $region57: #{tpu_custom_call.1} parent=0
    _
  %s6 = ssub.s32 1, %s4
  %s7 = scalar_select 0, %s6, %s4
  $region1: #{tpu_custom_call.1} parent=0
    #allocation2 [shape = 'u8[1024]{0}', space=vmem, size = 0x400, scoped, tag = 'input window, operand 0']
    #allocation3 [shape = 's32[2]{0}', space=sflag, size = 0x8, scoped, tag = 'scoped memory for tpu_custom_call.1']
    #allocation4 [shape = 's32[2]{0}', space=sflag, size = 0x8, scoped, tag = 'scoped memory for tpu_custom_call.1']
    #allocation5 [shape = 'u8[1024]{0}', space=vmem, size = 0x400, scoped, tag = 'input window, operand 1']
    #allocation6 [shape = 's32[2]{0}', space=sflag, size = 0x8, scoped, tag = 'scoped memory for tpu_custom_call.1']
    #allocation7 [shape = 'u8[8192]{0}', space=vmem, size = 0x2000, scoped, tag = 'input window, operand 2']
    #allocation8 [shape = 'u8[4096]{0}', space=vmem, size = 0x1000, scoped, tag = 'output window, operand 0']
    %8 = vsyncpa [#allocation3], 0
    %s9 = scalar_lea.sflag [#allocation3], 1
    %10 = vsyncpa %s9, 0
    %11 = vsyncpa [#allocation6], 0
    %s12 = scalar_lea.sflag [#allocation6], 1
    %13 = vsyncpa %s12, 0
    %14 = vsyncpa [#allocation4], 0
    %s15 = scalar_lea.sflag [#allocation4], 1
    %16 = vsyncpa %s15, 0
    loop: start=0, step=1, limit=6
    $region2: #{tpu_custom_call.1} parent=1 // loop_pre_header
      _
    $region3: #{tpu_custom_call.1} parent=1 // loop_header
      %s18 = sphi 0, %s22
      %p19 = scmp.ge.s32.totalorder %s18, 6
      %s25 = sphi 0, %s37
      %s26 = sphi 0, %s33
      %s27 = sphi 0, %s25
      %s28 = sphi 0, %s26
      %s29 = sphi 0, %s27
      %s30 = sphi 0, %s28
      %s42 = sphi 0, %s44
      %s45 = sphi 0, %s42
      %s46 = sphi 0, %s45
      %s62 = sphi 0, %s46
      %s70 = sphi 0, %s72
      %s73 = sphi 0, %s70
      %s74 = sphi 0, %s73
      %s90 = sphi 0, %s74
      %s96 = sphi 0, %s98
      %s99 = sphi 0, %s96
      %s100 = sphi 0, %s99
      %s116 = sphi 0, %s100
      %s124 = sphi 0, %s126
      %s127 = sphi 0, %s124
      %s128 = sphi 0, %s127
      %s144 = sphi 0, %s128
    $region4: #{tpu_custom_call.1} parent=1 // loop_header_branch
      %21 = sbr.rel (%p19) target = $region8
    $region5: #{tpu_custom_call.1} parent=1 // loop_body
      %s23 = ssub.s32 %s18, 1
      %s24 = ssub.s32 %s18, 2
      %s31 = sadd.s32 1, %s26
      %p32 = scmp.ge.s32.totalorder %s31, 2
      %s33 = scalar_select %p32, 0, %s31
      %s34 = sadd.s32 1, %s25
      %s35 = scalar_select %p32, %s34, %s25
      %p36 = scmp.ge.s32.totalorder %s35, 2
      %s37 = scalar_select %p36, 0, %s35
      %s38 = ssub.s32 %s25, %s37
      %s39 = ssub.s32 %s26, %s33
      %s40 = sor.u32 %s38, %s39
      %p41 = scmp.eq.s32.totalorder %s40, 0
      %s43 = sadd.s32 %s42, 1
      %s44 = scalar_select %p41, %s42, %s43
      %p47 = pneg %p41
      %p48 = scmp.eq.s32.totalorder %s18, 3
      %p49 = por %p47, %p48
      %p50 = scmp.ne.s32.totalorder %s42, %s45
      %p51 = scmp.eq.s32.totalorder %s18, 0
      %p52 = por %p50, %p51
      %p53 = scmp.ne.s32.totalorder %s42, %s45
      %p54 = scmp.eq.s32.totalorder %s23, 3
      %p55 = por %p53, %p54
      %p56 = scmp.ne.s32.totalorder %s45, %s46
      %p57 = scmp.eq.s32.totalorder %s23, 0
      %p58 = por %p56, %p57
      %p59 = scmp.ne.s32.totalorder %s45, %s46
      %p60 = scmp.eq.s32.totalorder %s24, 3
      %p61 = por %p59, %p60
      %p63 = scmp.ne.s32.totalorder %s46, %s62
      %p64 = scmp.eq.s32.totalorder %s24, 0
      %p65 = por %p63, %p64
      %s66 = ssub.s32 %s25, %s37
      %s67 = ssub.s32 %s26, %s33
      %s68 = sor.u32 %s66, %s67
      %p69 = scmp.eq.s32.totalorder %s68, 0
      %s71 = sadd.s32 %s70, 1
      %s72 = scalar_select %p69, %s70, %s71
      %p75 = pneg %p69
      %p76 = scmp.eq.s32.totalorder %s18, 3
      %p77 = por %p75, %p76
      %p78 = scmp.ne.s32.totalorder %s70, %s73
      %p79 = scmp.eq.s32.totalorder %s18, 0
      %p80 = por %p78, %p79
      %p81 = scmp.ne.s32.totalorder %s70, %s73
      %p82 = scmp.eq.s32.totalorder %s23, 3
      %p83 = por %p81, %p82
      %p84 = scmp.ne.s32.totalorder %s73, %s74
      %p85 = scmp.eq.s32.totalorder %s23, 0
      %p86 = por %p84, %p85
      %p87 = scmp.ne.s32.totalorder %s73, %s74
      %p88 = scmp.eq.s32.totalorder %s24, 3
      %p89 = por %p87, %p88
      %p91 = scmp.ne.s32.totalorder %s74, %s90
      %p92 = scmp.eq.s32.totalorder %s24, 0
      %p93 = por %p91, %p92
      %s94 = ssub.s32 %s25, %s37
      %p95 = scmp.eq.s32.totalorder %s94, 0
      %s97 = sadd.s32 %s96, 1
      %s98 = scalar_select %p95, %s96, %s97
      %p101 = pneg %p95
      %p102 = scmp.eq.s32.totalorder %s18, 3
      %p103 = por %p101, %p102
      %p104 = scmp.ne.s32.totalorder %s96, %s99
      %p105 = scmp.eq.s32.totalorder %s18, 0
      %p106 = por %p104, %p105
      %p107 = scmp.ne.s32.totalorder %s96, %s99
      %p108 = scmp.eq.s32.totalorder %s23, 3
      %p109 = por %p107, %p108
      %p110 = scmp.ne.s32.totalorder %s99, %s100
      %p111 = scmp.eq.s32.totalorder %s23, 0
      %p112 = por %p110, %p111
      %p113 = scmp.ne.s32.totalorder %s99, %s100
      %p114 = scmp.eq.s32.totalorder %s24, 3
      %p115 = por %p113, %p114
      %p117 = scmp.ne.s32.totalorder %s100, %s116
      %p118 = scmp.eq.s32.totalorder %s24, 0
      %p119 = por %p117, %p118
      %s120 = ssub.s32 %s25, %s37
      %s121 = ssub.s32 %s26, %s33
      %s122 = sor.u32 %s120, %s121
      %p123 = scmp.eq.s32.totalorder %s122, 0
      %s125 = sadd.s32 %s124, 1
      %s126 = scalar_select %p123, %s124, %s125
      %p129 = pneg %p123
      %p130 = scmp.eq.s32.totalorder %s18, 3
      %p131 = por %p129, %p130
      %p132 = scmp.ne.s32.totalorder %s124, %s127
      %p133 = scmp.eq.s32.totalorder %s18, 0
      %p134 = por %p132, %p133
      %p135 = scmp.ne.s32.totalorder %s124, %s127
      %p136 = scmp.eq.s32.totalorder %s23, 3
      %p137 = por %p135, %p136
      %p138 = scmp.ne.s32.totalorder %s127, %s128
      %p139 = scmp.eq.s32.totalorder %s23, 0
      %p140 = por %p138, %p139
      %p141 = scmp.ne.s32.totalorder %s127, %s128
      %p142 = scmp.eq.s32.totalorder %s24, 3
      %p143 = por %p141, %p142
      %p145 = scmp.ne.s32.totalorder %s128, %s144
      %p146 = scmp.eq.s32.totalorder %s24, 0
      %p147 = por %p145, %p146
      %p148 = scmp.le.s32.totalorder 1, %s18
      %p149 = scmp.lt.s32.totalorder %s18, 5
      %p150 = pnand %p148, %p149
      %p151 = pneg %p150
      // Predicated region
      $region9: #{tpu_custom_call.1} parent=5 // pred_check
        _
      $region10: #{tpu_custom_call.1} parent=5 // pred_check_branch
        %153 = sbr.rel (%p150) target = $region12
      $region11: #{tpu_custom_call.1} parent=5 // pred_region
        %s154 = ssub.s32 %s18, 1
      $region12: #{tpu_custom_call.1} parent=5 // pred_fallthru
        _
      %p155 = scmp.lt.s32.totalorder %s18, 4
      // Predicated region
      $region13: #{tpu_custom_call.1} parent=5 // pred_check
        %p156 = pneg %p155
      $region14: #{tpu_custom_call.1} parent=5 // pred_check_branch
        %158 = sbr.rel (%p156) target = $region16
      $region15: #{tpu_custom_call.1} parent=5 // pred_region
        // Predicated region
        $region17: #{tpu_custom_call.1} parent=15 // pred_check
          %p159 = pneg %p52
        $region18: #{tpu_custom_call.1} parent=15 // pred_check_branch
          %161 = sbr.rel (%p159) target = $region20
        $region19: #{tpu_custom_call.1} parent=15 // pred_region
          %s162 = sand.u32 %s42, 1
          %s163 = scalar_lea.sflag [#allocation3], %s162
          %s164 = sand.u32 %s42, 1
          %s165 = scalar_lea.vmem [#allocation2], %s164
          %s167 = ssub.s32 16, 16
          %168 = vsyncadd %s163, %s167
          %s169 = smul.addr %s25, 2
          %s170 = sadd.s32 %s26, %s169
          %s171 = smul.addr %s170, 16
          %s172 = scalar_lea.hbm %s0, %s171
          %s174 = sshll.u32 %s165, 4
          %s175 = int_to_ptr.vmem [resolvable:$true] %s174
          %177 = dma.hbm_to_vmem [thread:$0]  %s172, 16, %s175, %s163
        $region20: #{tpu_custom_call.1} parent=15 // pred_fallthru
          _
        // Predicated region
        $region21: #{tpu_custom_call.1} parent=15 // pred_check
          %p178 = pneg %p80
        $region22: #{tpu_custom_call.1} parent=15 // pred_check_branch
          %180 = sbr.rel (%p178) target = $region24
        $region23: #{tpu_custom_call.1} parent=15 // pred_region
          %s181 = sand.u32 %s18, 1
          %s182 = scalar_lea.sflag [#allocation6], %s181
          %s183 = sand.u32 %s70, 1
          %s184 = scalar_lea.vmem [#allocation5], %s183
          %s186 = ssub.s32 16, 16
          %187 = vsyncadd %s182, %s186
          %s188 = smul.addr %s25, 2
          %s189 = sadd.s32 %s26, %s188
          %s190 = smul.addr %s189, 16
          %s191 = scalar_lea.hbm %s1, %s190
          %s193 = sshll.u32 %s184, 4
          %s194 = int_to_ptr.vmem [resolvable:$true] %s193
          %196 = dma.hbm_to_vmem [thread:$0]  %s191, 16, %s194, %s182
        $region24: #{tpu_custom_call.1} parent=15 // pred_fallthru
          _
        // Predicated region
        $region25: #{tpu_custom_call.1} parent=15 // pred_check
          %p197 = pneg %p106
        $region26: #{tpu_custom_call.1} parent=15 // pred_check_branch
          %199 = sbr.rel (%p197) target = $region28
        $region27: #{tpu_custom_call.1} parent=15 // pred_region
          %s200 = sand.u32 %s18, 1
          %s201 = scalar_lea.sflag [#allocation6], %s200
          %s202 = sand.u32 %s96, 1
          %s203 = smul.addr %s202, 8
          %s204 = scalar_lea.vmem [#allocation7], %s203
          %s206 = ssub.s32 128, 128
          %207 = vsyncadd %s201, %s206
          %s208 = smul.addr %s25, 2
          %s209 = smul.addr %s208, 64
          %s210 = scalar_lea.hbm %s2, %s209
          %s212 = sshll.u32 %s204, 4
          %s213 = int_to_ptr.vmem [resolvable:$true] %s212
          %215 = dma.hbm_to_vmem [thread:$0]  %s210, 128, %s213, %s201
        $region28: #{tpu_custom_call.1} parent=15 // pred_fallthru
          _
      $region16: #{tpu_custom_call.1} parent=5 // pred_fallthru
        _
      %p216 = scmp.le.s32.totalorder 1, %s18
      %p217 = scmp.lt.s32.totalorder %s18, 5
      %p218 = pnand %p216, %p217
      %p219 = pneg %p218
      // Predicated region
      $region29: #{tpu_custom_call.1} parent=5 // pred_check
        _
      $region30: #{tpu_custom_call.1} parent=5 // pred_check_branch
        %221 = sbr.rel (%p218) target = $region32
      $region31: #{tpu_custom_call.1} parent=5 // pred_region
        %s222 = ssub.s32 %s18, 1
        %s223 = sand.u32 %s45, 1
        %s224 = scalar_lea.sflag [#allocation3], %s223
        %s225 = sand.u32 %s45, 1
        %s226 = scalar_lea.vmem [#allocation2], %s225
        // Predicated region
        $region33: #{tpu_custom_call.1} parent=31 // pred_check
          %p227 = pneg %p58
        $region34: #{tpu_custom_call.1} parent=31 // pred_check_branch
          %229 = sbr.rel (%p227) target = $region36
        $region35: #{tpu_custom_call.1} parent=31 // pred_region
          %230 = dma.done %s224, 16
        $region36: #{tpu_custom_call.1} parent=31 // pred_fallthru
          _
        %s231 = sand.u32 %s23, 1
        %s232 = scalar_lea.sflag [#allocation6], %s231
        %s233 = sand.u32 %s73, 1
        %s234 = scalar_lea.vmem [#allocation5], %s233
        // Predicated region
        $region37: #{tpu_custom_call.1} parent=31 // pred_check
          %p235 = pneg %p86
        $region38: #{tpu_custom_call.1} parent=31 // pred_check_branch
          %237 = sbr.rel (%p235) target = $region40
        $region39: #{tpu_custom_call.1} parent=31 // pred_region
          %238 = dma.done %s232, 16
        $region40: #{tpu_custom_call.1} parent=31 // pred_fallthru
          _
        %s239 = sand.u32 %s23, 1
        %s240 = scalar_lea.sflag [#allocation6], %s239
        %s241 = sand.u32 %s99, 1
        %s242 = smul.addr %s241, 8
        %s243 = scalar_lea.vmem [#allocation7], %s242
        // Predicated region
        $region41: #{tpu_custom_call.1} parent=31 // pred_check
          %p244 = pneg %p112
        $region42: #{tpu_custom_call.1} parent=31 // pred_check_branch
          %246 = sbr.rel (%p244) target = $region44
        $region43: #{tpu_custom_call.1} parent=31 // pred_region
          %247 = dma.done %s240, 128
        $region44: #{tpu_custom_call.1} parent=31 // pred_fallthru
          _
        %s248 = sand.u32 %s45, 1
        %s249 = scalar_lea.sflag [#allocation3], %s248
        %s250 = sand.u32 %s45, 1
        %s251 = scalar_lea.vmem [#allocation2], %s250
        %p252 = pneg %p58
        %p253 = pneg %p55
        %s254 = sand.u32 %s23, 1
        %s255 = scalar_lea.sflag [#allocation6], %s254
        %s256 = sand.u32 %s73, 1
        %s257 = scalar_lea.vmem [#allocation5], %s256
        %p258 = pneg %p86
        %p259 = pneg %p83
        %s260 = sand.u32 %s23, 1
        %s261 = scalar_lea.sflag [#allocation6], %s260
        %s262 = sand.u32 %s99, 1
        %s263 = smul.addr %s262, 8
        %s264 = scalar_lea.vmem [#allocation7], %s263
        %p265 = pneg %p112
        %p266 = pneg %p109
        %p267 = pneg %p140
        %p268 = pneg %p137
        %s269 = sand.u32 %s127, 1
        %s270 = scalar_lea.sflag [#allocation4], %s269
        %s271 = sand.u32 %s127, 1
        %s272 = smul.addr %s271, 4
        %s273 = scalar_lea.vmem [#allocation8], %s272
        %v274 = vld [vmem:[%s226] sm:$0x1]
        %v275 = vld [vmem:[%s234] sm:$0x1]
        %v276 = vlaneseq
        %v277 = vshrl.u32 %v276, 7
        %v278 = vadd.s32 %v277, 8
        %v279 = vcvt.s32.f32 %v277
        %v280 = vcvt.s32.f32 %v278
        %v282 = vlaneseq
        %v283 = vshrl.u32 %v282, 7
        %v284 = vsub.s32 0, %v283
        %v285 = vrot.slane %v274, %v284
        %v287 = vsub.f32 %v279, %v285
        %v288 = vsub.f32 %v280, %v285
        %v289 = vmul.f32 %v287, %v287
        %v290 = vmul.f32 %v288, %v288
        %v291 = vsub.f32 0.0, %v289
        %v292 = vsub.f32 0.0, %v290
        %v293 = vmul.f32 %v291, 0.22222222
        %v294 = vmul.f32 %v292, 0.22222222
        %v296 = vlaneseq
        %v297 = vshrl.u32 %v296, 7
        %v298 = vsub.s32 0, %v297
        %v299 = vrot.slane %v275, %v298
        %v301 = vsub.f32 %v279, %v299
        %v302 = vsub.f32 %v280, %v299
        %v303 = vmul.f32 %v301, %v301
        %v304 = vmul.f32 %v302, %v302
        %v305 = vsub.f32 0.0, %v303
        %v306 = vsub.f32 0.0, %v304
        %v307 = vmul.f32 %v305, 0.22222222
        %v308 = vmul.f32 %v306, 0.22222222
        %v309 = vmax.f32 %v293, %v294
        %v310 = vrot.slane %v309, 4
        %v311 = vmax.f32 %v309, %v310
        %v312 = vrot.slane %v311, 2
        %v313 = vmax.f32 %v311, %v312
        %v314 = vrot.slane %v313, 1
        %v315 = vmax.f32 %v313, %v314
        %v316 = vsub.f32 %v293, %v315
        %v317 = vsub.f32 %v294, %v315
        %v318 = vmax.f32 %v307, %v308
        %v319 = vrot.slane %v318, 4
        %v320 = vmax.f32 %v318, %v319
        %v321 = vrot.slane %v320, 2
        %v322 = vmax.f32 %v320, %v321
        %v323 = vrot.slane %v322, 1
        %v324 = vmax.f32 %v322, %v323
        %v325 = vsub.f32 %v307, %v324
        %v326 = vsub.f32 %v308, %v324
        %v327 = vmul.f32 %v316, 1.442695
        %v328 = vpow.pop %v327
        %v329 = vmul.f32 %v317, 1.442695
        %v330 = vpow.pop %v329
        %v331 = vmul.f32 %v325, 1.442695
        %v332 = vpow.pop %v331
        %v333 = vmul.f32 %v326, 1.442695
        %v334 = vpow.pop %v333
        %v335 = vadd.f32 %v328, %v330
        %v336 = vrot.slane %v335, 4
        %v337 = vadd.f32 %v335, %v336
        %v338 = vrot.slane %v337, 2
        %v339 = vadd.f32 %v337, %v338
        %v340 = vrot.slane %v339, 1
        %v341 = vadd.f32 %v339, %v340
        %v342 = vadd.f32 %v332, %v334
        %v343 = vrot.slane %v342, 4
        %v344 = vadd.f32 %v342, %v343
        %v345 = vrot.slane %v344, 2
        %v346 = vadd.f32 %v344, %v345
        %v347 = vrot.slane %v346, 1
        %v348 = vadd.f32 %v346, %v347
        %v349 = vmul.f32 %v341, %v348
        %v352 = vcombine.high %v332, %v332
        %v354 = vunpack.c.l.s4 1966171168
        %v355 = vunpack.c.0.s8 %v354
        %v356 = vlaneseq
        %v357 = vshrl.u32 %v356, 7
        %v358 = vsub.s32 %v355, %v357
        %v359 = vrot.slane %v332, %v358
        %v361 = vunpack.c.l.s4 1966171168
        %v362 = vunpack.c.0.s8 %v361
        %v363 = vlaneseq
        %v364 = vshrl.u32 %v363, 7
        %v365 = vsub.s32 %v362, %v364
        %v366 = vrot.slane %v352, %v365
        %v367 = vcombine.high %v359, %v359
        %v368 = vcombine.high %v366, %v366
        %v370 = vunpack.c.l.s4 1966171168
        %v371 = vunpack.c.0.s8 %v370
        %v372 = vlaneseq
        %v373 = vshrl.u32 %v372, 7
        %v374 = vsub.s32 %v371, %v373
        %v375 = vrot.slane %v359, %v374
        %v377 = vunpack.c.l.s4 1966171168
        %v378 = vunpack.c.0.s8 %v377
        %v379 = vlaneseq
        %v380 = vshrl.u32 %v379, 7
        %v381 = vsub.s32 %v378, %v380
        %v382 = vrot.slane %v366, %v381
        %v384 = vunpack.c.l.s4 1966171168
        %v385 = vunpack.c.0.s8 %v384
        %v386 = vlaneseq
        %v387 = vshrl.u32 %v386, 7
        %v388 = vsub.s32 %v385, %v387
        %v389 = vrot.slane %v367, %v388
        %v391 = vunpack.c.l.s4 1966171168
        %v392 = vunpack.c.0.s8 %v391
        %v393 = vlaneseq
        %v394 = vshrl.u32 %v393, 7
        %v395 = vsub.s32 %v392, %v394
        %v396 = vrot.slane %v368, %v395
        %v397 = vcombine.high %v375, %v375
        %v398 = vcombine.high %v382, %v382
        %v399 = vcombine.high %v389, %v389
        %v400 = vcombine.high %v396, %v396
        %v401 = vcombine.high %v334, %v334
        %v403 = vunpack.c.l.s4 1966171168
        %v404 = vunpack.c.0.s8 %v403
        %v405 = vlaneseq
        %v406 = vshrl.u32 %v405, 7
        %v407 = vsub.s32 %v404, %v406
        %v408 = vrot.slane %v334, %v407
        %v410 = vunpack.c.l.s4 1966171168
        %v411 = vunpack.c.0.s8 %v410
        %v412 = vlaneseq
        %v413 = vshrl.u32 %v412, 7
        %v414 = vsub.s32 %v411, %v413
        %v415 = vrot.slane %v401, %v414
        %v416 = vcombine.high %v408, %v408
        %v417 = vcombine.high %v415, %v415
        %v419 = vunpack.c.l.s4 1966171168
        %v420 = vunpack.c.0.s8 %v419
        %v421 = vlaneseq
        %v422 = vshrl.u32 %v421, 7
        %v423 = vsub.s32 %v420, %v422
        %v424 = vrot.slane %v408, %v423
        %v426 = vunpack.c.l.s4 1966171168
        %v427 = vunpack.c.0.s8 %v426
        %v428 = vlaneseq
        %v429 = vshrl.u32 %v428, 7
        %v430 = vsub.s32 %v427, %v429
        %v431 = vrot.slane %v415, %v430
        %v433 = vunpack.c.l.s4 1966171168
        %v434 = vunpack.c.0.s8 %v433
        %v435 = vlaneseq
        %v436 = vshrl.u32 %v435, 7
        %v437 = vsub.s32 %v434, %v436
        %v438 = vrot.slane %v416, %v437
        %v440 = vunpack.c.l.s4 1966171168
        %v441 = vunpack.c.0.s8 %v440
        %v442 = vlaneseq
        %v443 = vshrl.u32 %v442, 7
        %v444 = vsub.s32 %v441, %v443
        %v445 = vrot.slane %v417, %v444
        %v446 = vcombine.high %v424, %v424
        %v447 = vcombine.high %v431, %v431
        %v448 = vcombine.high %v438, %v438
        %v449 = vcombine.high %v445, %v445
        %v450 = vlaneseq
        %v451 = vshrl.u32 %v450, 7
        %v452 = vsub.s32 0, %v451
        %v453 = vrot.slane %v375, %v452
        %v454 = vlaneseq
        %v455 = vshrl.u32 %v454, 7
        %v456 = vsub.s32 0, %v455
        %v457 = vrot.slane %v389, %v456
        %v458 = vlaneseq
        %v459 = vshrl.u32 %v458, 7
        %v460 = vsub.s32 0, %v459
        %v461 = vrot.slane %v397, %v460
        %v462 = vlaneseq
        %v463 = vshrl.u32 %v462, 7
        %v464 = vsub.s32 0, %v463
        %v465 = vrot.slane %v399, %v464
        %v466 = vlaneseq
        %v467 = vshrl.u32 %v466, 7
        %v468 = vsub.s32 0, %v467
        %v469 = vrot.slane %v382, %v468
        %v470 = vlaneseq
        %v471 = vshrl.u32 %v470, 7
        %v472 = vsub.s32 0, %v471
        %v473 = vrot.slane %v396, %v472
        %v474 = vlaneseq
        %v475 = vshrl.u32 %v474, 7
        %v476 = vsub.s32 0, %v475
        %v477 = vrot.slane %v398, %v476
        %v478 = vlaneseq
        %v479 = vshrl.u32 %v478, 7
        %v480 = vsub.s32 0, %v479
        %v481 = vrot.slane %v400, %v480
        %v482 = vlaneseq
        %v483 = vshrl.u32 %v482, 7
        %v484 = vsub.s32 0, %v483
        %v485 = vrot.slane %v424, %v484
        %v486 = vlaneseq
        %v487 = vshrl.u32 %v486, 7
        %v488 = vsub.s32 0, %v487
        %v489 = vrot.slane %v438, %v488
        %v490 = vlaneseq
        %v491 = vshrl.u32 %v490, 7
        %v492 = vsub.s32 0, %v491
        %v493 = vrot.slane %v446, %v492
        %v494 = vlaneseq
        %v495 = vshrl.u32 %v494, 7
        %v496 = vsub.s32 0, %v495
        %v497 = vrot.slane %v448, %v496
        %v498 = vlaneseq
        %v499 = vshrl.u32 %v498, 7
        %v500 = vsub.s32 0, %v499
        %v501 = vrot.slane %v431, %v500
        %v502 = vlaneseq
        %v503 = vshrl.u32 %v502, 7
        %v504 = vsub.s32 0, %v503
        %v505 = vrot.slane %v445, %v504
        %v506 = vlaneseq
        %v507 = vshrl.u32 %v506, 7
        %v508 = vsub.s32 0, %v507
        %v509 = vrot.slane %v447, %v508
        %v510 = vlaneseq
        %v511 = vshrl.u32 %v510, 7
        %v512 = vsub.s32 0, %v511
        %v513 = vrot.slane %v449, %v512
        %v530 = vmul.f32 %v453, %v328
        %v531 = vmul.f32 %v453, %v330
        %v532 = vmul.f32 %v457, %v328
        %v533 = vmul.f32 %v457, %v330
        %v534 = vmul.f32 %v461, %v328
        %v535 = vmul.f32 %v461, %v330
        %v536 = vmul.f32 %v465, %v328
        %v537 = vmul.f32 %v465, %v330
        %v538 = vmul.f32 %v469, %v328
        %v539 = vmul.f32 %v469, %v330
        %v540 = vmul.f32 %v473, %v328
        %v541 = vmul.f32 %v473, %v330
        %v542 = vmul.f32 %v477, %v328
        %v543 = vmul.f32 %v477, %v330
        %v544 = vmul.f32 %v481, %v328
        %v545 = vmul.f32 %v481, %v330
        %v546 = vmul.f32 %v485, %v328
        %v547 = vmul.f32 %v485, %v330
        %v548 = vmul.f32 %v489, %v328
        %v549 = vmul.f32 %v489, %v330
        %v550 = vmul.f32 %v493, %v328
        %v551 = vmul.f32 %v493, %v330
        %v552 = vmul.f32 %v497, %v328
        %v553 = vmul.f32 %v497, %v330
        %v554 = vmul.f32 %v501, %v328
        %v555 = vmul.f32 %v501, %v330
        %v556 = vmul.f32 %v505, %v328
        %v557 = vmul.f32 %v505, %v330
        %v558 = vmul.f32 %v509, %v328
        %v559 = vmul.f32 %v509, %v330
        %v560 = vmul.f32 %v513, %v328
        %v561 = vmul.f32 %v513, %v330
        %v562 = vld [vmem:[%s243] sm:$0xff]
        %v564 = vcombine.high %v562, %v562
        %566 = vmatprep.subr.mxu0 0.0
        %567 = vmatpush1.msra.mxu0 %v545
        %568 = vmatprep.subr.mxu0 0.0
        %569 = vmatpush1.msra.mxu0 %v544
        %570 = vmatprep.subr.mxu0 0.0
        %571 = vmatpush1.msra.mxu0 %v543
        %572 = vmatprep.subr.mxu0 0.0
        %573 = vmatpush1.msra.mxu0 %v542
        %574 = vmatprep.subr.mxu0 0.0
        %575 = vmatpush1.msra.mxu0 %v541
        %576 = vmatprep.subr.mxu0 0.0
        %577 = vmatpush1.msra.mxu0 %v540
        %578 = vmatprep.subr.mxu0 0.0
        %579 = vmatpush1.msra.mxu0 %v539
        %580 = vmatprep.subr.mxu0 0.0
        %581 = vmatpush1.msra.mxu0 %v538
        %582 = vmatprep.subr.mxu0 0.0
        %583 = vmatpush1.msra.mxu0 %v537
        %584 = vmatprep.subr.mxu0 0.0
        %585 = vmatpush1.msra.mxu0 %v536
        %586 = vmatprep.subr.mxu0 0.0
        %587 = vmatpush1.msra.mxu0 %v535
        %588 = vmatprep.subr.mxu0 0.0
        %589 = vmatpush1.msra.mxu0 %v534
        %590 = vmatprep.subr.mxu0 0.0
        %591 = vmatpush1.msra.mxu0 %v533
        %592 = vmatprep.subr.mxu0 0.0
        %593 = vmatpush1.msra.mxu0 %v532
        %594 = vmatprep.subr.mxu0 0.0
        %595 = vmatpush1.msra.mxu0 %v531
        %596 = vmatprep.subr.mxu0 0.0
        %597 = vmatpush1.msra.mxu0 %v530
        %598 = vmatprep.subr.mxu0 0.0
        %599 = vmatpush2.msra.mxu0 %v561
        %600 = vmatprep.subr.mxu0 0.0
        %601 = vmatpush2.msra.mxu0 %v560
        %602 = vmatprep.subr.mxu0 0.0
        %603 = vmatpush2.msra.mxu0 %v559
        %604 = vmatprep.subr.mxu0 0.0
        %605 = vmatpush2.msra.mxu0 %v558
        %606 = vmatprep.subr.mxu0 0.0
        %607 = vmatpush2.msra.mxu0 %v557
        %608 = vmatprep.subr.mxu0 0.0
        %609 = vmatpush2.msra.mxu0 %v556
        %610 = vmatprep.subr.mxu0 0.0
        %611 = vmatpush2.msra.mxu0 %v555
        %612 = vmatprep.subr.mxu0 0.0
        %613 = vmatpush2.msra.mxu0 %v554
        %614 = vmatprep.subr.mxu0 0.0
        %615 = vmatpush2.msra.mxu0 %v553
        %616 = vmatprep.subr.mxu0 0.0
        %617 = vmatpush2.msra.mxu0 %v552
        %618 = vmatprep.subr.mxu0 0.0
        %619 = vmatpush2.msra.mxu0 %v551
        %620 = vmatprep.subr.mxu0 0.0
        %621 = vmatpush2.msra.mxu0 %v550
        %622 = vmatprep.subr.mxu0 0.0
        %623 = vmatpush2.msra.mxu0 %v549
        %624 = vmatprep.subr.mxu0 0.0
        %625 = vmatpush2.msra.mxu0 %v548
        %626 = vmatprep.subr.mxu0 0.0
        %627 = vmatpush2.msra.mxu0 %v547
        %628 = vmatprep.subr.mxu0 0.0
        %629 = vmatpush2.msra.mxu0 %v546
        %630 = vmatprep.mubr.f32.mxu0 %v564
        %631 = vmatmul.mubr.f32.gmra.mxu0 %v562
        %v632 = vpop.f32.mrf.mxu0
        %v633 = vadd.f32 0.0, %v632
        %v634 = vpop.f32.mrf.mxu0
        %635 = vdwg.mxu0
        %v636 = vrcp.pop %v349
        %v637 = vmul.f32 %v633, %v636
        %638 = vst [vmem:[%s273] sm:$0xf] %v637
        %s639 = sand.u32 %s127, 1
        %s640 = scalar_lea.sflag [#allocation4], %s639
        %s641 = sand.u32 %s127, 1
        %s642 = smul.addr %s641, 4
        %s643 = scalar_lea.vmem [#allocation8], %s642
        // Predicated region
        $region45: #{tpu_custom_call.1} parent=31 // pred_check
          %p644 = pneg %p137
        $region46: #{tpu_custom_call.1} parent=31 // pred_check_branch
          %646 = sbr.rel (%p644) target = $region48
        $region47: #{tpu_custom_call.1} parent=31 // pred_region
          %s648 = ssub.s32 64, 64
          %649 = vsyncadd %s640, %s648
          %s650 = smul.addr %s27, 2
          %s651 = sadd.s32 %s28, %s650
          %s652 = smul.addr %s651, 64
          %s653 = scalar_lea.hbm %s3, %s652
          %s655 = sshll.u32 %s643, 4
          %s656 = int_to_ptr.vmem [resolvable:$true] %s655
          %658 = dma.vmem_to_hbm [thread:$0]  %s656, 64, %s653, %s640
        $region48: #{tpu_custom_call.1} parent=31 // pred_fallthru
          _
      $region32: #{tpu_custom_call.1} parent=5 // pred_fallthru
        _
      %p659 = scmp.le.s32.totalorder 2, %s18
      // Predicated region
      $region49: #{tpu_custom_call.1} parent=5 // pred_check
        %p660 = pneg %p659
      $region50: #{tpu_custom_call.1} parent=5 // pred_check_branch
        %662 = sbr.rel (%p660) target = $region52
      $region51: #{tpu_custom_call.1} parent=5 // pred_region
        %s663 = ssub.s32 %s18, 2
        // Predicated region
        $region53: #{tpu_custom_call.1} parent=51 // pred_check
          %p664 = pneg %p143
        $region54: #{tpu_custom_call.1} parent=51 // pred_check_branch
          %666 = sbr.rel (%p664) target = $region56
        $region55: #{tpu_custom_call.1} parent=51 // pred_region
          %s667 = sand.u32 %s128, 1
          %s668 = scalar_lea.sflag [#allocation4], %s667
          %s669 = sand.u32 %s128, 1
          %s670 = smul.addr %s669, 4
          %s671 = scalar_lea.vmem [#allocation8], %s670
          %672 = dma.done %s668, 64
        $region56: #{tpu_custom_call.1} parent=51 // pred_fallthru
          _
      $region52: #{tpu_custom_call.1} parent=5 // pred_fallthru
        _
    $region6: #{tpu_custom_call.1} parent=1 // loop_footer
      %s22 = sadd.s32 1, %s18
    $region7: #{tpu_custom_call.1} parent=1 // loop_footer_branch
      %17 = sbr.rel target = $region3
    $region8: #{tpu_custom_call.1} parent=1 // loop_exit
      _
    %673 = vsyncpa [#allocation3], 1
    %s674 = scalar_lea.sflag [#allocation3], 1
    %675 = vsyncpa %s674, 1
    %676 = vsyncpa [#allocation6], 1
    %s677 = scalar_lea.sflag [#allocation6], 1
    %678 = vsyncpa %s677, 1
    %679 = vsyncpa [#allocation4], 1
    %s680 = scalar_lea.sflag [#allocation4], 1
    %681 = vsyncpa %s680, 1

</llo_original>
